<compile_context>
chip_gen: v5e
topology: v5e:2x2
jax: 0.10.0
libtpu: 0.0.40
codegen_flags: <defaults>
</compile_context>

<pallas_src>
import jax
import jax.numpy as jnp
from jax.experimental import pallas as pl
from jax.experimental.pallas import tpu as pltpu


# ----------------------------------------------------------------------------
# Small host-side helpers
# ----------------------------------------------------------------------------
def _ceil_to(n, m):
    return ((n + m - 1) // m) * m


def _pad2d(a, rows, cols):
    return jnp.pad(a, ((0, rows - a.shape[0]), (0, cols - a.shape[1])))


def build_graph_operators(edge_index, n_nodes):
    """edge_index: [2, E] int32, row 0 = source j, row 1 = target i."""
    src, tgt = edge_index[0], edge_index[1]
    gather = jax.nn.one_hot(src, n_nodes, dtype=jnp.bfloat16)             # [E, N]
    scatter = jax.nn.one_hot(tgt, n_nodes, dtype=jnp.bfloat16).T          # [N, E]
    deg = jnp.sum(jax.nn.one_hot(tgt, n_nodes, dtype=jnp.float32), axis=0)
    inv_deg = (1.0 / jnp.maximum(deg, 1.0)).reshape(n_nodes, 1)           # [N, 1]
    return gather, scatter, inv_deg


def init_nnconv_params(key, edge_feat_dim, hid_edge_nn_dim, in_dim, out_dim):
    k1, k2, k3 = jax.random.split(key, 3)
    scale = 0.1
    return {
        "w1": scale * jax.random.normal(k1, (edge_feat_dim, hid_edge_nn_dim), jnp.float32),
        "b1": jnp.zeros((1, hid_edge_nn_dim), jnp.float32),
        "w2": scale * jax.random.normal(k2, (hid_edge_nn_dim, in_dim * out_dim), jnp.float32),
        "b2": jnp.zeros((1, in_dim * out_dim), jnp.float32),
        "wroot": scale * jax.random.normal(k3, (in_dim, out_dim), jnp.float32),
        "bias": jnp.zeros((1, out_dim), jnp.float32),
    }


# ----------------------------------------------------------------------------
# Fused VGAE encoder kernel: conv1 -> conv2 -> (conv_mu | conv_logvar fused)
# ----------------------------------------------------------------------------
def _make_vgae_kernel(fe, b1_row, layers):
    """layers: list of dicts with static ints: din, dout, he_lo, he_hi,
       w2/b2/wr/bias row offsets into the param slab, plus mean/relu flags."""

    def kernel(x_ref, ea_ref, g_ref, s_ref, invdeg_ref, w1b1_ref, p_ref, out_ref):
        def dot32(a, b):
            return jnp.dot(a, b, preferred_element_type=jnp.float32)

        x = x_ref[...]                                  # [N, in]   f32
        ea = ea_ref[...]                                # [E, Fe]   f32
        gather = g_ref[...]                             # [E, N]    bf16 (exact 0/1)
        scatter = s_ref[...]                            # [N, E]    bf16 (exact 0/1)
        inv_deg = invdeg_ref[...]                       # [N, 1]    f32

        # Fused edge MLP hidden layer for ALL four NNConv edge networks: one
        # matmul producing a lane-dense [E, 4*He] block, one ReLU.
        w1 = w1b1_ref[0:fe, :]                          # [Fe, 4*He]
        b1 = w1b1_ref[b1_row:b1_row + 1, :]             # [1,  4*He]
        h_all = jnp.maximum(dot32(ea, w1) + b1, 0.0)    # [E, 4*He]

        h = x
        for lyr in layers:
            din, dout = lyr["din"], lyr["dout"]
            lo, hi = lyr["he_lo"], lyr["he_hi"]
            hew = hi - lo
            he = h_all[:, lo:hi]                        # [E, hew]

            # Static slices into the packed parameter slab (8-aligned rows).
            w2f = p_ref[lyr["w2"]:lyr["w2"] + din * hew, 0:dout]     # [din*hew, dout]
            b2 = p_ref[lyr["b2"]:lyr["b2"] + din, 0:dout]            # [din, dout]
            wroot = p_ref[lyr["wr"]:lyr["wr"] + din, 0:dout]         # [din, dout]
            bias = p_ref[lyr["bias"]:lyr["bias"] + 1, 0:dout]        # [1, dout]

            # Gather source node features x_j via exact bf16 one-hot matmul
            # (promoted to f32 inside the dot; accumulation stays f32).
            xj = dot32(gather, h)                                    # [E, din]

            # Outer-product buffer: outer[:, i*hew + k] = xj[:, i] * he[:, k].
            # Feeds ONE K = din*hew matmul instead of `din` tiny matmuls.
            outer = jnp.concatenate(
                [xj[:, i:i + 1] * he for i in range(din)], axis=1)   # [E, din*hew]
            msg = dot32(outer, w2f) + dot32(xj, b2)                  # [E, dout]

            # Scatter-aggregate at target nodes; 'mean' = 1/deg multiply on VPU.
            agg = dot32(scatter, msg)                                # [N, dout]
            if lyr["mean"]:
                agg = agg * inv_deg

            y = agg + dot32(h, wroot) + bias
            if lyr["relu"]:
                y = jnp.maximum(y, 0.0)
            # TODO(synk): Dropout(p=0.2) between conv layers is identity (eval mode).
            h = y

        # Final layer is the fused (mu | logvar) layer of width 2*LAT:
        # one contiguous store, no in-kernel concatenate.
        out_ref[...] = h

    return kernel


# ----------------------------------------------------------------------------
# Host-side wrapper: parameter packing + pallas_call
# ----------------------------------------------------------------------------
def vgae_encoder_forward(x, edge_index, edge_attr, params):
    n_nodes, in_dim = x.shape
    n_edges, fe = edge_attr.shape
    hid = params["conv1"]["wroot"].shape[1]
    lat = params["conv_mu"]["wroot"].shape[1]
    he = params["conv1"]["w1"].shape[1]                 # hid_edge_nn_dim

    gather, scatter, inv_deg = build_graph_operators(edge_index, n_nodes)

    # --- Edge-MLP slab: lane-concat all four first Linear layers ------------
    names = ("conv1", "conv2", "conv_mu", "conv_logvar")
    w1_cat = jnp.concatenate([params[n]["w1"] for n in names], axis=1)   # [Fe, 4He]
    b1_cat = jnp.concatenate([params[n]["b1"] for n in names], axis=1)   # [1, 4He]
    r_fe = _ceil_to(fe, 8)
    w1b1 = jnp.concatenate([_pad2d(w1_cat, r_fe, 4 * he),
                            _pad2d(b1_cat, 8, 4 * he)], axis=0)          # [r_fe+8, 4He]

    # --- Per-layer message / root parameters --------------------------------
    def w2_to_flat(w2, din, dout):
        # [He, din*dout] -> [din*He, dout], row order i*He + k.
        return w2.reshape(he, din, dout).transpose(1, 0, 2).reshape(din * he, dout)

    w2f1 = w2_to_flat(params["conv1"]["w2"], in_dim, hid)
    b2_1 = params["conv1"]["b2"].reshape(in_dim, hid)
    w2f2 = w2_to_flat(params["conv2"]["w2"], hid, hid)
    b2_2 = params["conv2"]["b2"].reshape(hid, hid)

    # Fused mu/logvar layer (out = 2*lat): block-structured message weights so
    # mu columns only see the mu edge-hidden block and logvar columns the
    # logvar block (zeros elsewhere are exact).
    w2_mu = params["conv_mu"]["w2"].reshape(he, hid, lat).transpose(1, 0, 2)      # [hid, He, lat]
    w2_lv = params["conv_logvar"]["w2"].reshape(he, hid, lat).transpose(1, 0, 2)  # [hid, He, lat]
    z = jnp.zeros((hid, he, lat), jnp.float32)
    w2f3 = jnp.concatenate([jnp.concatenate([w2_mu, z], axis=2),
                            jnp.concatenate([z, w2_lv], axis=2)],
                           axis=1).reshape(hid * 2 * he, 2 * lat)                 # [hid*2He, 2lat]
    b2_3 = jnp.concatenate([params["conv_mu"]["b2"].reshape(hid, lat),
                            params["conv_logvar"]["b2"].reshape(hid, lat)], axis=1)
    wroot3 = jnp.concatenate([params["conv_mu"]["wroot"],
                              params["conv_logvar"]["wroot"]], axis=1)
    bias3 = jnp.concatenate([params["conv_mu"]["bias"],
                             params["conv_logvar"]["bias"]], axis=1)

    layer_defs = [
        # (w2flat, b2, wroot, bias, din, dout, he_lo, he_hi, mean, relu)
        (w2f1, b2_1, params["conv1"]["wroot"], params["conv1"]["bias"],
         in_dim, hid, 0, he, True, True),
        (w2f2, b2_2, params["conv2"]["wroot"], params["conv2"]["bias"],
         hid, hid, he, 2 * he, True, True),
        (w2f3, b2_3, wroot3, bias3,
         hid, 2 * lat, 2 * he, 4 * he, False, False),
    ]

    # --- Pack everything else into ONE parameter slab (8-aligned sections) --
    wp = max(hid, 2 * lat)
    parts, layers_meta, row = [], [], 0
    for (w2f, b2, wr, bs, din, dout, lo, hi, mean, relu) in layer_defs:
        offs = {}
        for key, arr in (("w2", w2f), ("b2", b2), ("wr", wr), ("bias", bs)):
            r = _ceil_to(arr.shape[0], 8)
            parts.append(_pad2d(arr, r, wp))
            offs[key] = row
            row += r
        layers_meta.append(dict(din=din, dout=dout, he_lo=lo, he_hi=hi,
                                mean=mean, relu=relu, **offs))
    pslab = jnp.concatenate(parts, axis=0)                                # [rows, wp]

    kernel = _make_vgae_kernel(fe, r_fe, layers_meta)

    inputs = (x, edge_attr, gather, scatter, inv_deg, w1b1, pslab)
    in_bytes = sum(int(a.size) * a.dtype.itemsize for a in inputs)
    out_bytes = n_nodes * 2 * lat * 4

    # Advisory cost estimate (matmul FLOPs of edge MLP + gather/message/scatter/root).
    flops = 2 * n_edges * fe * 4 * he
    for m in layers_meta:
        din, dout, hew = m["din"], m["dout"], m["he_hi"] - m["he_lo"]
        flops += 2 * n_edges * n_nodes * din          # gather
        flops += 2 * n_edges * din * hew * dout       # message
        flops += 2 * n_edges * din * dout             # bias term
        flops += 2 * n_nodes * n_edges * dout         # scatter
        flops += 2 * n_nodes * din * dout             # root
    cost = pl.CostEstimate(flops=int(flops), transcendentals=0,
                           bytes_accessed=int(in_bytes + out_bytes))

    vmem_limit = int(min(64 << 20, max(8 << 20, 8 * (in_bytes + out_bytes))))
    vmem_spec = pl.BlockSpec(memory_space=pltpu.MemorySpace.VMEM)

    out = pl.pallas_call(
        kernel,
        out_shape=jax.ShapeDtypeStruct((n_nodes, 2 * lat), jnp.float32),
        in_specs=[vmem_spec] * len(inputs),
        out_specs=vmem_spec,
        compiler_params=pltpu.CompilerParams(vmem_limit_bytes=vmem_limit),
        cost_estimate=cost,
    )(*inputs)

    return out[:, :lat], out[:, lat:]


# ----------------------------------------------------------------------------
# Pure-JAX reference (mirrors torch_geometric NNConv) for verification
# ----------------------------------------------------------------------------
def nnconv_ref(x, edge_index, edge_attr, p, aggr, apply_relu):
    src, tgt = edge_index[0], edge_index[1]
    n_nodes = x.shape[0]
    in_dim = x.shape[1]
    out_dim = p["wroot"].shape[1]
    h = jnp.maximum(edge_attr @ p["w1"] + p["b1"], 0.0)
    wedge = (h @ p["w2"] + p["b2"]).reshape(-1, in_dim, out_dim)        # [E, in, out]
    xj = x[src]                                                          # [E, in]
    msg = jnp.einsum("ei,eio->eo", xj, wedge)                            # [E, out]
    agg = jnp.zeros((n_nodes, out_dim), jnp.float32).at[tgt].add(msg)
    if aggr == "mean":
        deg = jnp.zeros((n_nodes, 1), jnp.float32).at[tgt].add(1.0)
        agg = agg / jnp.maximum(deg, 1.0)
    out = agg + x @ p["wroot"] + p["bias"]
    return jnp.maximum(out, 0.0) if apply_relu else out


def vgae_encoder_ref(x, edge_index, edge_attr, params):
    h = nnconv_ref(x, edge_index, edge_attr, params["conv1"], "mean", True)
    h = nnconv_ref(h, edge_index, edge_attr, params["conv2"], "mean", True)
    mu = nnconv_ref(h, edge_index, edge_attr, params["conv_mu"], "sum", False)
    logvar = nnconv_ref(h, edge_index, edge_attr, params["conv_logvar"], "sum", False)
    return mu, logvar


# ----------------------------------------------------------------------------
if __name__ == "__main__":
    # Small graph consistent with the module's forward signature.
    N_NODES = 8
    N_EDGES = 16
    IN_DIM = 4
    HID_DIM = 8
    LAT_DIM = 4
    EDGE_FEAT_DIM = 3
    HID_EDGE_NN_DIM = 32

    key = jax.random.PRNGKey(0)
    kx, ke, ks, kt, kp = jax.random.split(key, 5)

    x = jax.random.normal(kx, (N_NODES, IN_DIM), jnp.float32)
    edge_attr = jax.random.normal(ke, (N_EDGES, EDGE_FEAT_DIM), jnp.float32)
    src = jax.random.randint(ks, (N_EDGES,), 0, N_NODES, dtype=jnp.int32)
    tgt = jax.random.randint(kt, (N_EDGES,), 0, N_NODES, dtype=jnp.int32)
    edge_index = jnp.stack([src, tgt], axis=0)                           # [2, E]

    k1, k2, k3, k4 = jax.random.split(kp, 4)
    params = {
        "conv1": init_nnconv_params(k1, EDGE_FEAT_DIM, HID_EDGE_NN_DIM, IN_DIM, HID_DIM),
        "conv2": init_nnconv_params(k2, EDGE_FEAT_DIM, HID_EDGE_NN_DIM, HID_DIM, HID_DIM),
        "conv_mu": init_nnconv_params(k3, EDGE_FEAT_DIM, HID_EDGE_NN_DIM, HID_DIM, LAT_DIM),
        "conv_logvar": init_nnconv_params(k4, EDGE_FEAT_DIM, HID_EDGE_NN_DIM, HID_DIM, LAT_DIM),
    }

    mu, logvar = vgae_encoder_forward(x, edge_index, edge_attr, params)
    jax.block_until_ready((mu, logvar))

    mu_ref, logvar_ref = vgae_encoder_ref(x, edge_index, edge_attr, params)
    assert mu.shape == (N_NODES, LAT_DIM) and logvar.shape == (N_NODES, LAT_DIM)
    assert jnp.allclose(mu, mu_ref, atol=1e-4, rtol=1e-4)
    assert jnp.allclose(logvar, logvar_ref, atol=1e-4, rtol=1e-4)

    print("KERNEL_OK")
</pallas_src>

<mosaic_0001>
module attributes {stable_mosaic.version = 11 : i64} {
  func.func @kernel(%arg0: memref<8x4xf32, #tpu.memory_space<vmem>>, %arg1: memref<16x3xf32, #tpu.memory_space<vmem>>, %arg2: memref<16x8xbf16, #tpu.memory_space<vmem>>, %arg3: memref<8x16xbf16, #tpu.memory_space<vmem>>, %arg4: memref<8x1xf32, #tpu.memory_space<vmem>>, %arg5: memref<16x128xf32, #tpu.memory_space<vmem>>, %arg6: memref<968x8xf32, #tpu.memory_space<vmem>>, %arg7: memref<8x8xf32, #tpu.memory_space<vmem>>) attributes {dimension_semantics = [], scalar_prefetch = 0 : i64, scratch_operands = 0 : i64, tpu.core_type = #tpu.core_type<tc>} {
    %c0 = arith.constant 0 : index
    %c0_0 = arith.constant 0 : index
    %0 = vector.load %arg0[%c0, %c0_0] : memref<8x4xf32, #tpu.memory_space<vmem>>, vector<8x4xf32>
    %c0_1 = arith.constant 0 : index
    %c0_2 = arith.constant 0 : index
    %1 = vector.load %arg1[%c0_1, %c0_2] : memref<16x3xf32, #tpu.memory_space<vmem>>, vector<16x3xf32>
    %c0_3 = arith.constant 0 : index
    %c0_4 = arith.constant 0 : index
    %2 = vector.load %arg2[%c0_3, %c0_4] : memref<16x8xbf16, #tpu.memory_space<vmem>>, vector<16x8xbf16>
    %c0_5 = arith.constant 0 : index
    %c0_6 = arith.constant 0 : index
    %3 = vector.load %arg3[%c0_5, %c0_6] : memref<8x16xbf16, #tpu.memory_space<vmem>>, vector<8x16xbf16>
    %c0_7 = arith.constant 0 : index
    %c0_8 = arith.constant 0 : index
    %4 = vector.load %arg4[%c0_7, %c0_8] : memref<8x1xf32, #tpu.memory_space<vmem>>, vector<8x1xf32>
    %c0_9 = arith.constant 0 : index
    %c0_10 = arith.constant 0 : index
    %5 = vector.load %arg5[%c0_9, %c0_10] : memref<16x128xf32, #tpu.memory_space<vmem>>, vector<3x128xf32>
    %c8 = arith.constant 8 : index
    %c0_11 = arith.constant 0 : index
    %6 = vector.load %arg5[%c8, %c0_11] : memref<16x128xf32, #tpu.memory_space<vmem>>, vector<1x128xf32>
    %cst = arith.constant dense<0.000000e+00> : vector<16x128xf32>
    %7 = tpu.matmul %1, %5, %cst {dimension_numbers = #tpu.dot_dimension_numbers<[1], [0], [0], [1], [0, 0, 1, 1], [], []>} : vector<16x3xf32>, vector<3x128xf32>, vector<16x128xf32> -> vector<16x128xf32>
    %8 = vector.broadcast %6 : vector<1x128xf32> to vector<16x128xf32>
    %9 = arith.addf %7, %8 : vector<16x128xf32>
    %cst_12 = arith.constant 0.000000e+00 : f32
    %10 = vector.broadcast %cst_12 : f32 to vector<16x128xf32>
    %11 = arith.maximumf %9, %10 : vector<16x128xf32>
    %12 = vector.extract_strided_slice %11 {offsets = [0, 0], sizes = [16, 32], strides = [1, 1]} : vector<16x128xf32> to vector<16x32xf32>
    %c0_13 = arith.constant 0 : index
    %c0_14 = arith.constant 0 : index
    %13 = vector.load %arg6[%c0_13, %c0_14] : memref<968x8xf32, #tpu.memory_space<vmem>>, vector<128x8xf32>
    %c128 = arith.constant 128 : index
    %c0_15 = arith.constant 0 : index
    %14 = vector.load %arg6[%c128, %c0_15] : memref<968x8xf32, #tpu.memory_space<vmem>>, vector<4x8xf32>
    %c136 = arith.constant 136 : index
    %c0_16 = arith.constant 0 : index
    %15 = vector.load %arg6[%c136, %c0_16] : memref<968x8xf32, #tpu.memory_space<vmem>>, vector<4x8xf32>
    %c144 = arith.constant 144 : index
    %c0_17 = arith.constant 0 : index
    %16 = vector.load %arg6[%c144, %c0_17] : memref<968x8xf32, #tpu.memory_space<vmem>>, vector<1x8xf32>
    %cst_18 = arith.constant dense<0.000000e+00> : vector<16x4xf32>
    %17 = tpu.matmul %2, %0, %cst_18 {dimension_numbers = #tpu.dot_dimension_numbers<[1], [0], [0], [1], [0, 0, 1, 1], [], []>} : vector<16x8xbf16>, vector<8x4xf32>, vector<16x4xf32> -> vector<16x4xf32>
    %18 = vector.extract_strided_slice %17 {offsets = [0, 0], sizes = [16, 1], strides = [1, 1]} : vector<16x4xf32> to vector<16x1xf32>
    %19 = vector.broadcast %18 : vector<16x1xf32> to vector<16x32xf32>
    %20 = arith.mulf %19, %12 : vector<16x32xf32>
    %21 = vector.extract_strided_slice %17 {offsets = [0, 1], sizes = [16, 1], strides = [1, 1]} : vector<16x4xf32> to vector<16x1xf32>
    %22 = vector.broadcast %21 : vector<16x1xf32> to vector<16x32xf32>
    %23 = arith.mulf %22, %12 : vector<16x32xf32>
    %24 = vector.extract_strided_slice %17 {offsets = [0, 2], sizes = [16, 1], strides = [1, 1]} : vector<16x4xf32> to vector<16x1xf32>
    %25 = vector.broadcast %24 : vector<16x1xf32> to vector<16x32xf32>
    %26 = arith.mulf %25, %12 : vector<16x32xf32>
    %27 = vector.extract_strided_slice %17 {offsets = [0, 3], sizes = [16, 1], strides = [1, 1]} : vector<16x4xf32> to vector<16x1xf32>
    %28 = vector.broadcast %27 : vector<16x1xf32> to vector<16x32xf32>
    %29 = arith.mulf %28, %12 : vector<16x32xf32>
    %30 = tpu.concatenate %20, %23, %26, %29 in 1 : vector<16x32xf32>, vector<16x32xf32>, vector<16x32xf32>, vector<16x32xf32> -> vector<16x128xf32>
    %cst_19 = arith.constant dense<0.000000e+00> : vector<16x8xf32>
    %31 = tpu.matmul %30, %13, %cst_19 {dimension_numbers = #tpu.dot_dimension_numbers<[1], [0], [0], [1], [0, 0, 1, 1], [], []>} : vector<16x128xf32>, vector<128x8xf32>, vector<16x8xf32> -> vector<16x8xf32>
    %cst_20 = arith.constant dense<0.000000e+00> : vector<16x8xf32>
    %32 = tpu.matmul %17, %14, %cst_20 {dimension_numbers = #tpu.dot_dimension_numbers<[1], [0], [0], [1], [0, 0, 1, 1], [], []>} : vector<16x4xf32>, vector<4x8xf32>, vector<16x8xf32> -> vector<16x8xf32>
    %33 = arith.addf %31, %32 : vector<16x8xf32>
    %cst_21 = arith.constant dense<0.000000e+00> : vector<8x8xf32>
    %34 = tpu.matmul %3, %33, %cst_21 {dimension_numbers = #tpu.dot_dimension_numbers<[1], [0], [0], [1], [0, 0, 1, 1], [], []>} : vector<8x16xbf16>, vector<16x8xf32>, vector<8x8xf32> -> vector<8x8xf32>
    %35 = vector.broadcast %4 : vector<8x1xf32> to vector<8x8xf32>
    %36 = arith.mulf %34, %35 : vector<8x8xf32>
    %cst_22 = arith.constant dense<0.000000e+00> : vector<8x8xf32>
    %37 = tpu.matmul %0, %15, %cst_22 {dimension_numbers = #tpu.dot_dimension_numbers<[1], [0], [0], [1], [0, 0, 1, 1], [], []>} : vector<8x4xf32>, vector<4x8xf32>, vector<8x8xf32> -> vector<8x8xf32>
    %38 = arith.addf %36, %37 : vector<8x8xf32>
    %39 = vector.broadcast %16 : vector<1x8xf32> to vector<8x8xf32>
    %40 = arith.addf %38, %39 : vector<8x8xf32>
    %cst_23 = arith.constant 0.000000e+00 : f32
    %41 = vector.broadcast %cst_23 : f32 to vector<8x8xf32>
    %42 = arith.maximumf %40, %41 : vector<8x8xf32>
    %43 = vector.extract_strided_slice %11 {offsets = [0, 32], sizes = [16, 32], strides = [1, 1]} : vector<16x128xf32> to vector<16x32xf32>
    %c152 = arith.constant 152 : index
    %c0_24 = arith.constant 0 : index
    %44 = vector.load %arg6[%c152, %c0_24] : memref<968x8xf32, #tpu.memory_space<vmem>>, vector<256x8xf32>
    %c408 = arith.constant 408 : index
    %c0_25 = arith.constant 0 : index
    %45 = vector.load %arg6[%c408, %c0_25] : memref<968x8xf32, #tpu.memory_space<vmem>>, vector<8x8xf32>
    %c416 = arith.constant 416 : index
    %c0_26 = arith.constant 0 : index
    %46 = vector.load %arg6[%c416, %c0_26] : memref<968x8xf32, #tpu.memory_space<vmem>>, vector<8x8xf32>
    %c424 = arith.constant 424 : index
    %c0_27 = arith.constant 0 : index
    %47 = vector.load %arg6[%c424, %c0_27] : memref<968x8xf32, #tpu.memory_space<vmem>>, vector<1x8xf32>
    %cst_28 = arith.constant dense<0.000000e+00> : vector<16x8xf32>
    %48 = tpu.matmul %2, %42, %cst_28 {dimension_numbers = #tpu.dot_dimension_numbers<[1], [0], [0], [1], [0, 0, 1, 1], [], []>} : vector<16x8xbf16>, vector<8x8xf32>, vector<16x8xf32> -> vector<16x8xf32>
    %49 = vector.extract_strided_slice %48 {offsets = [0, 0], sizes = [16, 1], strides = [1, 1]} : vector<16x8xf32> to vector<16x1xf32>
    %50 = vector.broadcast %49 : vector<16x1xf32> to vector<16x32xf32>
    %51 = arith.mulf %50, %43 : vector<16x32xf32>
    %52 = vector.extract_strided_slice %48 {offsets = [0, 1], sizes = [16, 1], strides = [1, 1]} : vector<16x8xf32> to vector<16x1xf32>
    %53 = vector.broadcast %52 : vector<16x1xf32> to vector<16x32xf32>
    %54 = arith.mulf %53, %43 : vector<16x32xf32>
    %55 = vector.extract_strided_slice %48 {offsets = [0, 2], sizes = [16, 1], strides = [1, 1]} : vector<16x8xf32> to vector<16x1xf32>
    %56 = vector.broadcast %55 : vector<16x1xf32> to vector<16x32xf32>
    %57 = arith.mulf %56, %43 : vector<16x32xf32>
    %58 = vector.extract_strided_slice %48 {offsets = [0, 3], sizes = [16, 1], strides = [1, 1]} : vector<16x8xf32> to vector<16x1xf32>
    %59 = vector.broadcast %58 : vector<16x1xf32> to vector<16x32xf32>
    %60 = arith.mulf %59, %43 : vector<16x32xf32>
    %61 = vector.extract_strided_slice %48 {offsets = [0, 4], sizes = [16, 1], strides = [1, 1]} : vector<16x8xf32> to vector<16x1xf32>
    %62 = vector.broadcast %61 : vector<16x1xf32> to vector<16x32xf32>
    %63 = arith.mulf %62, %43 : vector<16x32xf32>
    %64 = vector.extract_strided_slice %48 {offsets = [0, 5], sizes = [16, 1], strides = [1, 1]} : vector<16x8xf32> to vector<16x1xf32>
    %65 = vector.broadcast %64 : vector<16x1xf32> to vector<16x32xf32>
    %66 = arith.mulf %65, %43 : vector<16x32xf32>
    %67 = vector.extract_strided_slice %48 {offsets = [0, 6], sizes = [16, 1], strides = [1, 1]} : vector<16x8xf32> to vector<16x1xf32>
    %68 = vector.broadcast %67 : vector<16x1xf32> to vector<16x32xf32>
    %69 = arith.mulf %68, %43 : vector<16x32xf32>
    %70 = vector.extract_strided_slice %48 {offsets = [0, 7], sizes = [16, 1], strides = [1, 1]} : vector<16x8xf32> to vector<16x1xf32>
    %71 = vector.broadcast %70 : vector<16x1xf32> to vector<16x32xf32>
    %72 = arith.mulf %71, %43 : vector<16x32xf32>
    %73 = tpu.concatenate %51, %54, %57, %60, %63, %66, %69, %72 in 1 : vector<16x32xf32>, vector<16x32xf32>, vector<16x32xf32>, vector<16x32xf32>, vector<16x32xf32>, vector<16x32xf32>, vector<16x32xf32>, vector<16x32xf32> -> vector<16x256xf32>
    %cst_29 = arith.constant dense<0.000000e+00> : vector<16x8xf32>
    %74 = tpu.matmul %73, %44, %cst_29 {dimension_numbers = #tpu.dot_dimension_numbers<[1], [0], [0], [1], [0, 0, 1, 1], [], []>} : vector<16x256xf32>, vector<256x8xf32>, vector<16x8xf32> -> vector<16x8xf32>
    %cst_30 = arith.constant dense<0.000000e+00> : vector<16x8xf32>
    %75 = tpu.matmul %48, %45, %cst_30 {dimension_numbers = #tpu.dot_dimension_numbers<[1], [0], [0], [1], [0, 0, 1, 1], [], []>} : vector<16x8xf32>, vector<8x8xf32>, vector<16x8xf32> -> vector<16x8xf32>
    %76 = arith.addf %74, %75 : vector<16x8xf32>
    %cst_31 = arith.constant dense<0.000000e+00> : vector<8x8xf32>
    %77 = tpu.matmul %3, %76, %cst_31 {dimension_numbers = #tpu.dot_dimension_numbers<[1], [0], [0], [1], [0, 0, 1, 1], [], []>} : vector<8x16xbf16>, vector<16x8xf32>, vector<8x8xf32> -> vector<8x8xf32>
    %78 = vector.broadcast %4 : vector<8x1xf32> to vector<8x8xf32>
    %79 = arith.mulf %77, %78 : vector<8x8xf32>
    %cst_32 = arith.constant dense<0.000000e+00> : vector<8x8xf32>
    %80 = tpu.matmul %42, %46, %cst_32 {dimension_numbers = #tpu.dot_dimension_numbers<[1], [0], [0], [1], [0, 0, 1, 1], [], []>} : vector<8x8xf32>, vector<8x8xf32>, vector<8x8xf32> -> vector<8x8xf32>
    %81 = arith.addf %79, %80 : vector<8x8xf32>
    %82 = vector.broadcast %47 : vector<1x8xf32> to vector<8x8xf32>
    %83 = arith.addf %81, %82 : vector<8x8xf32>
    %cst_33 = arith.constant 0.000000e+00 : f32
    %84 = vector.broadcast %cst_33 : f32 to vector<8x8xf32>
    %85 = arith.maximumf %83, %84 : vector<8x8xf32>
    %86 = vector.extract_strided_slice %11 {offsets = [0, 64], sizes = [16, 64], strides = [1, 1]} : vector<16x128xf32> to vector<16x64xf32>
    %c432 = arith.constant 432 : index
    %c0_34 = arith.constant 0 : index
    %87 = vector.load %arg6[%c432, %c0_34] : memref<968x8xf32, #tpu.memory_space<vmem>>, vector<512x8xf32>
    %c944 = arith.constant 944 : index
    %c0_35 = arith.constant 0 : index
    %88 = vector.load %arg6[%c944, %c0_35] : memref<968x8xf32, #tpu.memory_space<vmem>>, vector<8x8xf32>
    %c952 = arith.constant 952 : index
    %c0_36 = arith.constant 0 : index
    %89 = vector.load %arg6[%c952, %c0_36] : memref<968x8xf32, #tpu.memory_space<vmem>>, vector<8x8xf32>
    %c960 = arith.constant 960 : index
    %c0_37 = arith.constant 0 : index
    %90 = vector.load %arg6[%c960, %c0_37] : memref<968x8xf32, #tpu.memory_space<vmem>>, vector<1x8xf32>
    %cst_38 = arith.constant dense<0.000000e+00> : vector<16x8xf32>
    %91 = tpu.matmul %2, %85, %cst_38 {dimension_numbers = #tpu.dot_dimension_numbers<[1], [0], [0], [1], [0, 0, 1, 1], [], []>} : vector<16x8xbf16>, vector<8x8xf32>, vector<16x8xf32> -> vector<16x8xf32>
    %92 = vector.extract_strided_slice %91 {offsets = [0, 0], sizes = [16, 1], strides = [1, 1]} : vector<16x8xf32> to vector<16x1xf32>
    %93 = vector.broadcast %92 : vector<16x1xf32> to vector<16x64xf32>
    %94 = arith.mulf %93, %86 : vector<16x64xf32>
    %95 = vector.extract_strided_slice %91 {offsets = [0, 1], sizes = [16, 1], strides = [1, 1]} : vector<16x8xf32> to vector<16x1xf32>
    %96 = vector.broadcast %95 : vector<16x1xf32> to vector<16x64xf32>
    %97 = arith.mulf %96, %86 : vector<16x64xf32>
    %98 = vector.extract_strided_slice %91 {offsets = [0, 2], sizes = [16, 1], strides = [1, 1]} : vector<16x8xf32> to vector<16x1xf32>
    %99 = vector.broadcast %98 : vector<16x1xf32> to vector<16x64xf32>
    %100 = arith.mulf %99, %86 : vector<16x64xf32>
    %101 = vector.extract_strided_slice %91 {offsets = [0, 3], sizes = [16, 1], strides = [1, 1]} : vector<16x8xf32> to vector<16x1xf32>
    %102 = vector.broadcast %101 : vector<16x1xf32> to vector<16x64xf32>
    %103 = arith.mulf %102, %86 : vector<16x64xf32>
    %104 = vector.extract_strided_slice %91 {offsets = [0, 4], sizes = [16, 1], strides = [1, 1]} : vector<16x8xf32> to vector<16x1xf32>
    %105 = vector.broadcast %104 : vector<16x1xf32> to vector<16x64xf32>
    %106 = arith.mulf %105, %86 : vector<16x64xf32>
    %107 = vector.extract_strided_slice %91 {offsets = [0, 5], sizes = [16, 1], strides = [1, 1]} : vector<16x8xf32> to vector<16x1xf32>
    %108 = vector.broadcast %107 : vector<16x1xf32> to vector<16x64xf32>
    %109 = arith.mulf %108, %86 : vector<16x64xf32>
    %110 = vector.extract_strided_slice %91 {offsets = [0, 6], sizes = [16, 1], strides = [1, 1]} : vector<16x8xf32> to vector<16x1xf32>
    %111 = vector.broadcast %110 : vector<16x1xf32> to vector<16x64xf32>
    %112 = arith.mulf %111, %86 : vector<16x64xf32>
    %113 = vector.extract_strided_slice %91 {offsets = [0, 7], sizes = [16, 1], strides = [1, 1]} : vector<16x8xf32> to vector<16x1xf32>
    %114 = vector.broadcast %113 : vector<16x1xf32> to vector<16x64xf32>
    %115 = arith.mulf %114, %86 : vector<16x64xf32>
    %116 = tpu.concatenate %94, %97, %100, %103, %106, %109, %112, %115 in 1 : vector<16x64xf32>, vector<16x64xf32>, vector<16x64xf32>, vector<16x64xf32>, vector<16x64xf32>, vector<16x64xf32>, vector<16x64xf32>, vector<16x64xf32> -> vector<16x512xf32>
    %cst_39 = arith.constant dense<0.000000e+00> : vector<16x8xf32>
    %117 = tpu.matmul %116, %87, %cst_39 {dimension_numbers = #tpu.dot_dimension_numbers<[1], [0], [0], [1], [0, 0, 1, 1], [], []>} : vector<16x512xf32>, vector<512x8xf32>, vector<16x8xf32> -> vector<16x8xf32>
    %cst_40 = arith.constant dense<0.000000e+00> : vector<16x8xf32>
    %118 = tpu.matmul %91, %88, %cst_40 {dimension_numbers = #tpu.dot_dimension_numbers<[1], [0], [0], [1], [0, 0, 1, 1], [], []>} : vector<16x8xf32>, vector<8x8xf32>, vector<16x8xf32> -> vector<16x8xf32>
    %119 = arith.addf %117, %118 : vector<16x8xf32>
    %cst_41 = arith.constant dense<0.000000e+00> : vector<8x8xf32>
    %120 = tpu.matmul %3, %119, %cst_41 {dimension_numbers = #tpu.dot_dimension_numbers<[1], [0], [0], [1], [0, 0, 1, 1], [], []>} : vector<8x16xbf16>, vector<16x8xf32>, vector<8x8xf32> -> vector<8x8xf32>
    %cst_42 = arith.constant dense<0.000000e+00> : vector<8x8xf32>
    %121 = tpu.matmul %85, %89, %cst_42 {dimension_numbers = #tpu.dot_dimension_numbers<[1], [0], [0], [1], [0, 0, 1, 1], [], []>} : vector<8x8xf32>, vector<8x8xf32>, vector<8x8xf32> -> vector<8x8xf32>
    %122 = arith.addf %120, %121 : vector<8x8xf32>
    %123 = vector.broadcast %90 : vector<1x8xf32> to vector<8x8xf32>
    %124 = arith.addf %122, %123 : vector<8x8xf32>
    %c0_43 = arith.constant 0 : index
    %c0_44 = arith.constant 0 : index
    %125 = vector.load %arg7[%c0_43, %c0_44] : memref<8x8xf32, #tpu.memory_space<vmem>>, vector<8x8xf32>
    tpu.vector_store %arg7[%c0_43, %c0_44], %124 {strides = array<i32>} : memref<8x8xf32, #tpu.memory_space<vmem>>, vector<8x8xf32>,
    return
  }
}

</mosaic_0001>

<llo_original>
// kernel: tpu_custom_call.1
$region0: #{tpu_custom_call.1}
  #allocation0 [shape = 'u32[]', space=smem, size = 0x4, offset = 0x4, fixed_abs, tag = 'smem constant byte address 0x4 - core index']
  #allocation1 [shape = 'u32[72,128]{1,0:T(1,128)}', space=vmem, size = 0x9000, scoped, tag = 'internal scratch']
  %s0 = inlined_call_operand.vmem [shape: f32[8,4], index: 0, kind: input, shape index: {}]
  %s1 = inlined_call_operand.vmem [shape: f32[16,3], index: 1, kind: input, shape index: {}]
  %s2 = inlined_call_operand.vmem [shape: bf16[16,8], index: 2, kind: input, shape index: {}]
  %s3 = inlined_call_operand.vmem [shape: bf16[8,16], index: 3, kind: input, shape index: {}]
  %s4 = inlined_call_operand.vmem [shape: f32[8,1], index: 4, kind: input, shape index: {}]
  %s5 = inlined_call_operand.vmem [shape: f32[16,128], index: 5, kind: input, shape index: {}]
  %s6 = inlined_call_operand.vmem [shape: f32[968,8], index: 6, kind: input, shape index: {}]
  %s7 = inlined_call_operand.hbm [shape: f32[8,8], index: 7, kind: output, shape index: {}]
  %s8 = sld [smem:[#allocation0]]
  $region38: #{tpu_custom_call.1} parent=0
    _
  %s10 = ssub.s32 1, %s8
  %s11 = scalar_select 0, %s10, %s8
  $region1: #{tpu_custom_call.1} parent=0
    #allocation2 [shape = 'u8[4096]{0}', space=vmem, size = 0x1000, scoped, tag = 'output window, operand 0, single buffered']
    #allocation3 [shape = 's32[1]{0}', space=sflag, size = 0x4, scoped, tag = 'scoped memory for tpu_custom_call.1']
    %12 = vsyncpa [#allocation3], 0
    // Predicated region
    $region2: #{tpu_custom_call.1} parent=1 // pred_check
      _
    $region3: #{tpu_custom_call.1} parent=1 // pred_check_branch
      %14 = sbr.rel (0) target = $region5
    $region4: #{tpu_custom_call.1} parent=1 // pred_region
      _
    $region5: #{tpu_custom_call.1} parent=1 // pred_fallthru
      _
    // Predicated region
    $region6: #{tpu_custom_call.1} parent=1 // pred_check
      _
    $region7: #{tpu_custom_call.1} parent=1 // pred_check_branch
      %16 = sbr.rel (0) target = $region9
    $region8: #{tpu_custom_call.1} parent=1 // pred_region
      _
    $region9: #{tpu_custom_call.1} parent=1 // pred_fallthru
      _
    // Predicated region
    $region10: #{tpu_custom_call.1} parent=1 // pred_check
      _
    $region11: #{tpu_custom_call.1} parent=1 // pred_check_branch
      %18 = sbr.rel (0) target = $region13
    $region12: #{tpu_custom_call.1} parent=1 // pred_region
      _
    $region13: #{tpu_custom_call.1} parent=1 // pred_fallthru
      _
    // Predicated region
    $region14: #{tpu_custom_call.1} parent=1 // pred_check
      _
    $region15: #{tpu_custom_call.1} parent=1 // pred_check_branch
      %20 = sbr.rel (0) target = $region17
    $region16: #{tpu_custom_call.1} parent=1 // pred_region
      _
    $region17: #{tpu_custom_call.1} parent=1 // pred_fallthru
      _
    // Predicated region
    $region18: #{tpu_custom_call.1} parent=1 // pred_check
      _
    $region19: #{tpu_custom_call.1} parent=1 // pred_check_branch
      %22 = sbr.rel (0) target = $region21
    $region20: #{tpu_custom_call.1} parent=1 // pred_region
      _
    $region21: #{tpu_custom_call.1} parent=1 // pred_fallthru
      _
    // Predicated region
    $region22: #{tpu_custom_call.1} parent=1 // pred_check
      _
    $region23: #{tpu_custom_call.1} parent=1 // pred_check_branch
      %24 = sbr.rel (0) target = $region25
    $region24: #{tpu_custom_call.1} parent=1 // pred_region
      _
    $region25: #{tpu_custom_call.1} parent=1 // pred_fallthru
      _
    // Predicated region
    $region26: #{tpu_custom_call.1} parent=1 // pred_check
      _
    $region27: #{tpu_custom_call.1} parent=1 // pred_check_branch
      %26 = sbr.rel (0) target = $region29
    $region28: #{tpu_custom_call.1} parent=1 // pred_region
      _
    $region29: #{tpu_custom_call.1} parent=1 // pred_fallthru
      _
    %v27 = vld [vmem:[%s0] sm:$0xff]
    %v28 = vld [vmem:[%s1] sm:$0xff]
    %v29 = vld [vmem:[%s1 + $0x8] sm:$0xff]
    %v30 = vld [vmem:[%s2] sm:$0xf]
    %v31 = vld [vmem:[%s2 + $0x4] sm:$0xf]
    %v32 = vld [vmem:[%s3] sm:$0xf]
    %v33 = vld [vmem:[%s4] sm:$0xff]
    %v34 = vld [vmem:[%s5] sm:$0x7]
    %v35 = vld [vmem:[%s5 + $0x8] sm:$0x1]
    %v36 = vperm.slane %v35, 0
    %vm37 = vcmask 23552
    %v39 = vsel %vm37, %v28, 0
    %v42 = vsel %vm37, %v29, 0
    %vm44 = vcmask 1042432
    %v46 = vsel %vm44, %v34, 0
    %48 = vmatpush.msra.mxu0 0.0
    %49 = vmatpush.msra.mxu0 0.0
    %50 = vmatpush.msra.mxu0 0.0
    %51 = vmatpush.msra.mxu0 0.0
    %52 = vmatpush.msra.mxu0 0.0
    %53 = vmatpush.msra.mxu0 0.0
    %54 = vmatpush.msra.mxu0 0.0
    %55 = vmatpush.msra.mxu0 0.0
    %56 = vmatpush.msra.mxu0 0.0
    %57 = vmatpush.msra.mxu0 0.0
    %58 = vmatpush.msra.mxu0 0.0
    %59 = vmatpush.msra.mxu0 0.0
    %60 = vmatpush.msra.mxu0 0.0
    %61 = vmatpush.msra.mxu0 0.0
    %62 = vmatpush.msra.mxu0 0.0
    %63 = vmatpush.msra.mxu0 %v46
    %64 = vmatmul.f32.gmra.mxu0 %v39
    %v65 = vpop.f32.mrf.mxu0
    %v66 = vadd.f32 %v36, %v65
    %67 = vmatmul.f32.gmra.mxu0 %v42
    %v68 = vpop.f32.mrf.mxu0
    %v69 = vadd.f32 %v36, %v68
    %70 = vdwg.mxu0
    %v71 = vmax.f32 %v66, 0.0
    %v72 = vmax.f32 %v69, 0.0
    %v73 = vld [vmem:[%s6] sm:$0xff]
    %v74 = vld [vmem:[%s6 + $0x8] sm:$0xff]
    %v75 = vld [vmem:[%s6 + $0x10] sm:$0xff]
    %v76 = vld [vmem:[%s6 + $0x18] sm:$0xff]
    %v77 = vld [vmem:[%s6 + $0x20] sm:$0xff]
    %v78 = vld [vmem:[%s6 + $0x28] sm:$0xff]
    %v79 = vld [vmem:[%s6 + $0x30] sm:$0xff]
    %v80 = vld [vmem:[%s6 + $0x38] sm:$0xff]
    %v81 = vld [vmem:[%s6 + $0x40] sm:$0xff]
    %v82 = vld [vmem:[%s6 + $0x48] sm:$0xff]
    %v83 = vld [vmem:[%s6 + $0x50] sm:$0xff]
    %v84 = vld [vmem:[%s6 + $0x58] sm:$0xff]
    %v85 = vld [vmem:[%s6 + $0x60] sm:$0xff]
    %v86 = vld [vmem:[%s6 + $0x68] sm:$0xff]
    %v87 = vld [vmem:[%s6 + $0x70] sm:$0xff]
    %v88 = vld [vmem:[%s6 + $0x78] sm:$0xff]
    %v89 = vld [vmem:[%s6 + $0x80] sm:$0xf]
    %v90 = vld [vmem:[%s6 + $0x88] sm:$0xf]
    %v91 = vld [vmem:[%s6 + $0x90] sm:$0x1]
    %v94 = vunpack.c.l.b16 %v30
    %v95 = vunpack.c.l.b16 %v31
    %v96 = vpack.c.b16 %v95, %v94
    %vm97 = vcmask 64512
    %v99 = vsel %vm97, %v96, 0
    %101 = vmatpush.msra.mxu0 0.0
    %102 = vmatpush.msra.mxu0 0.0
    %103 = vmatpush.msra.mxu0 0.0
    %104 = vmatpush.msra.mxu0 0.0
    %105 = vmatpush.msra.mxu0 0.0
    %106 = vmatpush.msra.mxu0 0.0
    %107 = vmatpush.msra.mxu0 0.0
    %108 = vmatpush.msra.mxu0 0.0
    %109 = vmatpush.msra.mxu0 0.0
    %110 = vmatpush.msra.mxu0 0.0
    %111 = vmatpush.msra.mxu0 0.0
    %112 = vmatpush.msra.mxu0 0.0
    %113 = vmatpush.msra.mxu0 0.0
    %114 = vmatpush.msra.mxu0 0.0
    %115 = vmatpush.msra.mxu0 0.0
    %116 = vmatpush.msra.mxu0 %v27
    %117 = vmatmul.bf16.gmra.mxu0 %v99
    %v118 = vpop.f32.mrf.mxu0
    %v119 = vadd.f32 0.0, %v118
    %v120 = vpop.f32.mrf.mxu0
    %v121 = vadd.f32 0.0, %v120
    %122 = vdwg.mxu0
    %124 = vset.pattern.permute.xlu0 0
    %125 = vperm.xlu0 %124, %v119
    %v126 = vpop.permute.xlu0 %125
    %129 = vset.pattern.permute.xlu0 0
    %130 = vperm.xlu0 %129, %v121
    %v131 = vpop.permute.xlu0 %130
    %v133 = vmul.f32 %v126, %v71
    %v134 = vmul.f32 %v131, %v72
    %135 = vset.pattern.permute.xlu0 1
    %136 = vperm.xlu0 %135, %v119
    %v137 = vpop.permute.xlu0 %136
    %139 = vset.pattern.permute.xlu0 1
    %140 = vperm.xlu0 %139, %v121
    %v141 = vpop.permute.xlu0 %140
    %v143 = vmul.f32 %v137, %v71
    %v144 = vmul.f32 %v141, %v72
    %145 = vset.pattern.permute.xlu0 2
    %146 = vperm.xlu0 %145, %v119
    %v147 = vpop.permute.xlu0 %146
    %149 = vset.pattern.permute.xlu0 2
    %150 = vperm.xlu0 %149, %v121
    %v151 = vpop.permute.xlu0 %150
    %v153 = vmul.f32 %v147, %v71
    %v154 = vmul.f32 %v151, %v72
    %155 = vset.pattern.permute.xlu0 3
    %156 = vperm.xlu0 %155, %v119
    %v157 = vpop.permute.xlu0 %156
    %159 = vset.pattern.permute.xlu0 3
    %160 = vperm.xlu0 %159, %v121
    %v161 = vpop.permute.xlu0 %160
    %v163 = vmul.f32 %v157, %v71
    %v164 = vmul.f32 %v161, %v72
    %167 = vrot.lane.b32.xlu0 %v143, 32
    %v168 = vpop.permute.xlu0 %167
    %169 = vrot.lane.b32.xlu0 %v144, 32
    %v170 = vpop.permute.xlu0 %169
    %175 = vrot.lane.b32.xlu0 %v153, 64
    %v176 = vpop.permute.xlu0 %175
    %177 = vrot.lane.b32.xlu0 %v154, 64
    %v178 = vpop.permute.xlu0 %177
    %183 = vrot.lane.b32.xlu0 %v163, 96
    %v184 = vpop.permute.xlu0 %183
    %185 = vrot.lane.b32.xlu0 %v164, 96
    %v186 = vpop.permute.xlu0 %185
    %vm189 = vcmask 261120
    %v190 = vsel %vm189, %v133, %v168
    %v191 = vsel %vm189, %v134, %v170
    %vm192 = vcmask 523264
    %v193 = vsel %vm192, %v190, %v176
    %v194 = vsel %vm192, %v191, %v178
    %vm195 = vcmask 785408
    %v196 = vsel %vm195, %v193, %v184
    %v197 = vsel %vm195, %v194, %v186
    %vm198 = vcmask 31744
    %v199 = vsel %vm198, %v119, 0
    %v201 = vsel %vm198, %v121, 0
    %vm203 = vcmask 1043456
    %v205 = vsel %vm203, %v89, 0
    %207 = vmatpush.msra.mxu0 0.0
    %208 = vmatpush.msra.mxu0 0.0
    %209 = vmatpush.msra.mxu0 0.0
    %210 = vmatpush.msra.mxu0 0.0
    %211 = vmatpush.msra.mxu0 0.0
    %212 = vmatpush.msra.mxu0 0.0
    %213 = vmatpush.msra.mxu0 0.0
    %214 = vmatpush.msra.mxu0 0.0
    %215 = vmatpush.msra.mxu0 0.0
    %216 = vmatpush.msra.mxu0 0.0
    %217 = vmatpush.msra.mxu0 0.0
    %218 = vmatpush.msra.mxu0 0.0
    %219 = vmatpush.msra.mxu0 0.0
    %220 = vmatpush.msra.mxu0 0.0
    %221 = vmatpush.msra.mxu0 0.0
    %222 = vmatpush.msra.mxu0 %v205
    %223 = vmatmul.f32.gmra.mxu0 %v199
    %v224 = vpop.f32.mrf.mxu0
    %v225 = vadd.f32 0.0, %v224
    %226 = vmatmul.f32.gmra.mxu0 %v201
    %v227 = vpop.f32.mrf.mxu0
    %v228 = vadd.f32 0.0, %v227
    %229 = vdwg.mxu0
    %230 = vmatpush.msra.mxu0 %v88
    %231 = vmatpush.msra.mxu0 %v87
    %232 = vmatpush.msra.mxu0 %v86
    %233 = vmatpush.msra.mxu0 %v85
    %234 = vmatpush.msra.mxu0 %v84
    %235 = vmatpush.msra.mxu0 %v83
    %236 = vmatpush.msra.mxu0 %v82
    %237 = vmatpush.msra.mxu0 %v81
    %238 = vmatpush.msra.mxu0 %v80
    %239 = vmatpush.msra.mxu0 %v79
    %240 = vmatpush.msra.mxu0 %v78
    %241 = vmatpush.msra.mxu0 %v77
    %242 = vmatpush.msra.mxu0 %v76
    %243 = vmatpush.msra.mxu0 %v75
    %244 = vmatpush.msra.mxu0 %v74
    %245 = vmatpush.msra.mxu0 %v73
    %246 = vmatmul.f32.gmra.mxu0 %v196
    %v247 = vpop.f32.mrf.mxu0
    %v248 = vadd.f32 %v225, %v247
    %249 = vmatmul.f32.gmra.mxu0 %v197
    %v250 = vpop.f32.mrf.mxu0
    %v251 = vadd.f32 %v228, %v250
    %252 = vdwg.mxu0
    %vm253 = vcmask 130048
    %v255 = vsel %vm253, %v32, 0
    %257 = vmatpush.msra.mxu0 0.0
    %258 = vmatpush.msra.mxu0 0.0
    %259 = vmatpush.msra.mxu0 0.0
    %260 = vmatpush.msra.mxu0 0.0
    %261 = vmatpush.msra.mxu0 0.0
    %262 = vmatpush.msra.mxu0 0.0
    %263 = vmatpush.msra.mxu0 0.0
    %264 = vmatpush.msra.mxu0 0.0
    %265 = vmatpush.msra.mxu0 0.0
    %266 = vmatpush.msra.mxu0 0.0
    %267 = vmatpush.msra.mxu0 0.0
    %268 = vmatpush.msra.mxu0 0.0
    %269 = vmatpush.msra.mxu0 0.0
    %270 = vmatpush.msra.mxu0 0.0
    %271 = vmatpush.msra.mxu0 %v251
    %272 = vmatpush.msra.mxu0 %v248
    %273 = vmatmul.bf16.gmra.mxu0 %v255
    %v274 = vpop.f32.mrf.mxu0
    %v275 = vadd.f32 0.0, %v274
    %v276 = vpop.f32.mrf.mxu0
    %277 = vdwg.mxu0
    %279 = vset.pattern.permute.xlu0 0
    %280 = vperm.xlu0 %279, %v33
    %v281 = vpop.permute.xlu0 %280
    %v283 = vmul.f32 %v275, %v281
    %v285 = vsel %vm198, %v27, 0
    %v288 = vsel %vm203, %v90, 0
    %290 = vmatpush.msra.mxu0 0.0
    %291 = vmatpush.msra.mxu0 0.0
    %292 = vmatpush.msra.mxu0 0.0
    %293 = vmatpush.msra.mxu0 0.0
    %294 = vmatpush.msra.mxu0 0.0
    %295 = vmatpush.msra.mxu0 0.0
    %296 = vmatpush.msra.mxu0 0.0
    %297 = vmatpush.msra.mxu0 0.0
    %298 = vmatpush.msra.mxu0 0.0
    %299 = vmatpush.msra.mxu0 0.0
    %300 = vmatpush.msra.mxu0 0.0
    %301 = vmatpush.msra.mxu0 0.0
    %302 = vmatpush.msra.mxu0 0.0
    %303 = vmatpush.msra.mxu0 0.0
    %304 = vmatpush.msra.mxu0 0.0
    %305 = vmatpush.msra.mxu0 %v288
    %306 = vmatmul.f32.gmra.mxu0 %v285
    %v307 = vpop.f32.mrf.mxu0
    %v308 = vadd.f32 0.0, %v307
    %309 = vdwg.mxu0
    %v310 = vadd.f32 %v283, %v308
    %v311 = vperm.slane %v91, 0
    %v312 = vadd.f32 %v310, %v311
    %v313 = vmax.f32 %v312, 0.0
    %v314 = vld [vmem:[%s6 + $0x98] sm:$0xff]
    %v315 = vld [vmem:[%s6 + $0xa0] sm:$0xff]
    %v316 = vld [vmem:[%s6 + $0xa8] sm:$0xff]
    %v317 = vld [vmem:[%s6 + $0xb0] sm:$0xff]
    %v318 = vld [vmem:[%s6 + $0xb8] sm:$0xff]
    %v319 = vld [vmem:[%s6 + $0xc0] sm:$0xff]
    %v320 = vld [vmem:[%s6 + $0xc8] sm:$0xff]
    %v321 = vld [vmem:[%s6 + $0xd0] sm:$0xff]
    %v322 = vld [vmem:[%s6 + $0xd8] sm:$0xff]
    %v323 = vld [vmem:[%s6 + $0xe0] sm:$0xff]
    %v324 = vld [vmem:[%s6 + $0xe8] sm:$0xff]
    %v325 = vld [vmem:[%s6 + $0xf0] sm:$0xff]
    %v326 = vld [vmem:[%s6 + $0xf8] sm:$0xff]
    %v327 = vld [vmem:[%s6 + $0x100] sm:$0xff]
    %v328 = vld [vmem:[%s6 + $0x108] sm:$0xff]
    %v329 = vld [vmem:[%s6 + $0x110] sm:$0xff]
    %v330 = vld [vmem:[%s6 + $0x118] sm:$0xff]
    %v331 = vld [vmem:[%s6 + $0x120] sm:$0xff]
    %v332 = vld [vmem:[%s6 + $0x128] sm:$0xff]
    %v333 = vld [vmem:[%s6 + $0x130] sm:$0xff]
    %v334 = vld [vmem:[%s6 + $0x138] sm:$0xff]
    %v335 = vld [vmem:[%s6 + $0x140] sm:$0xff]
    %v336 = vld [vmem:[%s6 + $0x148] sm:$0xff]
    %v337 = vld [vmem:[%s6 + $0x150] sm:$0xff]
    %v338 = vld [vmem:[%s6 + $0x158] sm:$0xff]
    %v339 = vld [vmem:[%s6 + $0x160] sm:$0xff]
    %v340 = vld [vmem:[%s6 + $0x168] sm:$0xff]
    %v341 = vld [vmem:[%s6 + $0x170] sm:$0xff]
    %v342 = vld [vmem:[%s6 + $0x178] sm:$0xff]
    %v343 = vld [vmem:[%s6 + $0x180] sm:$0xff]
    %v344 = vld [vmem:[%s6 + $0x188] sm:$0xff]
    %v345 = vld [vmem:[%s6 + $0x190] sm:$0xff]
    %v346 = vld [vmem:[%s6 + $0x198] sm:$0xff]
    %v347 = vld [vmem:[%s6 + $0x1a0] sm:$0xff]
    %v348 = vld [vmem:[%s6 + $0x1a8] sm:$0x1]
    %349 = vmatpush.msra.mxu0 0.0
    %350 = vmatpush.msra.mxu0 0.0
    %351 = vmatpush.msra.mxu0 0.0
    %352 = vmatpush.msra.mxu0 0.0
    %353 = vmatpush.msra.mxu0 0.0
    %354 = vmatpush.msra.mxu0 0.0
    %355 = vmatpush.msra.mxu0 0.0
    %356 = vmatpush.msra.mxu0 0.0
    %357 = vmatpush.msra.mxu0 0.0
    %358 = vmatpush.msra.mxu0 0.0
    %359 = vmatpush.msra.mxu0 0.0
    %360 = vmatpush.msra.mxu0 0.0
    %361 = vmatpush.msra.mxu0 0.0
    %362 = vmatpush.msra.mxu0 0.0
    %363 = vmatpush.msra.mxu0 0.0
    %364 = vmatpush.msra.mxu0 %v313
    %365 = vmatmul.bf16.gmra.mxu0 %v99
    %v366 = vpop.f32.mrf.mxu0
    %v367 = vadd.f32 0.0, %v366
    %v368 = vpop.f32.mrf.mxu0
    %v369 = vadd.f32 0.0, %v368
    %370 = vdwg.mxu0
    %372 = vset.pattern.permute.xlu0 0
    %373 = vperm.xlu0 %372, %v367
    %v374 = vpop.permute.xlu0 %373
    %377 = vset.pattern.permute.xlu0 0
    %378 = vperm.xlu0 %377, %v369
    %v379 = vpop.permute.xlu0 %378
    %v381 = vmul.f32 %v374, %v71
    %v382 = vmul.f32 %v379, %v72
    %383 = vset.pattern.permute.xlu0 1
    %384 = vperm.xlu0 %383, %v367
    %v385 = vpop.permute.xlu0 %384
    %387 = vset.pattern.permute.xlu0 1
    %388 = vperm.xlu0 %387, %v369
    %v389 = vpop.permute.xlu0 %388
    %v391 = vmul.f32 %v385, %v71
    %v392 = vmul.f32 %v389, %v72
    %393 = vset.pattern.permute.xlu0 2
    %394 = vperm.xlu0 %393, %v367
    %v395 = vpop.permute.xlu0 %394
    %397 = vset.pattern.permute.xlu0 2
    %398 = vperm.xlu0 %397, %v369
    %v399 = vpop.permute.xlu0 %398
    %v401 = vmul.f32 %v395, %v71
    %v402 = vmul.f32 %v399, %v72
    %403 = vset.pattern.permute.xlu0 3
    %404 = vperm.xlu0 %403, %v367
    %v405 = vpop.permute.xlu0 %404
    %407 = vset.pattern.permute.xlu0 3
    %408 = vperm.xlu0 %407, %v369
    %v409 = vpop.permute.xlu0 %408
    %v411 = vmul.f32 %v405, %v71
    %v412 = vmul.f32 %v409, %v72
    %413 = vset.pattern.permute.xlu0 4
    %414 = vperm.xlu0 %413, %v367
    %v415 = vpop.permute.xlu0 %414
    %417 = vset.pattern.permute.xlu0 4
    %418 = vperm.xlu0 %417, %v369
    %v419 = vpop.permute.xlu0 %418
    %v421 = vmul.f32 %v415, %v71
    %v422 = vmul.f32 %v419, %v72
    %423 = vset.pattern.permute.xlu0 5
    %424 = vperm.xlu0 %423, %v367
    %v425 = vpop.permute.xlu0 %424
    %427 = vset.pattern.permute.xlu0 5
    %428 = vperm.xlu0 %427, %v369
    %v429 = vpop.permute.xlu0 %428
    %v431 = vmul.f32 %v425, %v71
    %v432 = vmul.f32 %v429, %v72
    %433 = vset.pattern.permute.xlu0 6
    %434 = vperm.xlu0 %433, %v367
    %v435 = vpop.permute.xlu0 %434
    %437 = vset.pattern.permute.xlu0 6
    %438 = vperm.xlu0 %437, %v369
    %v439 = vpop.permute.xlu0 %438
    %v441 = vmul.f32 %v435, %v71
    %v442 = vmul.f32 %v439, %v72
    %443 = vset.pattern.permute.xlu0 7
    %444 = vperm.xlu0 %443, %v367
    %v445 = vpop.permute.xlu0 %444
    %447 = vset.pattern.permute.xlu0 7
    %448 = vperm.xlu0 %447, %v369
    %v449 = vpop.permute.xlu0 %448
    %v451 = vmul.f32 %v445, %v71
    %v452 = vmul.f32 %v449, %v72
    %455 = vrot.lane.b32.xlu0 %v381, 96
    %v456 = vpop.permute.xlu0 %455
    %457 = vrot.lane.b32.xlu0 %v382, 96
    %v458 = vpop.permute.xlu0 %457
    %463 = vrot.lane.b32.xlu0 %v401, 32
    %v464 = vpop.permute.xlu0 %463
    %465 = vrot.lane.b32.xlu0 %v402, 32
    %v466 = vpop.permute.xlu0 %465
    %471 = vrot.lane.b32.xlu0 %v411, 64
    %v472 = vpop.permute.xlu0 %471
    %473 = vrot.lane.b32.xlu0 %v412, 64
    %v474 = vpop.permute.xlu0 %473
    %479 = vrot.lane.b32.xlu0 %v421, 96
    %v480 = vpop.permute.xlu0 %479
    %481 = vrot.lane.b32.xlu0 %v422, 96
    %v482 = vpop.permute.xlu0 %481
    %487 = vrot.lane.b32.xlu0 %v441, 32
    %v488 = vpop.permute.xlu0 %487
    %489 = vrot.lane.b32.xlu0 %v442, 32
    %v490 = vpop.permute.xlu0 %489
    %495 = vrot.lane.b32.xlu0 %v451, 64
    %v496 = vpop.permute.xlu0 %495
    %497 = vrot.lane.b32.xlu0 %v452, 64
    %v498 = vpop.permute.xlu0 %497
    %v501 = vsel %vm189, %v456, %v391
    %v502 = vsel %vm189, %v458, %v392
    %v503 = vsel %vm192, %v501, %v464
    %v504 = vsel %vm192, %v502, %v466
    %v505 = vsel %vm195, %v503, %v472
    %v506 = vsel %vm195, %v504, %v474
    %v507 = vsel %vm189, %v480, %v431
    %v508 = vsel %vm189, %v482, %v432
    %v509 = vsel %vm192, %v507, %v488
    %v510 = vsel %vm192, %v508, %v490
    %v511 = vsel %vm195, %v509, %v496
    %v512 = vsel %vm195, %v510, %v498
    %v513 = vsel %vm97, %v367, 0
    %v515 = vsel %vm97, %v369, 0
    %517 = vmatpush.msra.mxu0 0.0
    %518 = vmatpush.msra.mxu0 0.0
    %519 = vmatpush.msra.mxu0 0.0
    %520 = vmatpush.msra.mxu0 0.0
    %521 = vmatpush.msra.mxu0 0.0
    %522 = vmatpush.msra.mxu0 0.0
    %523 = vmatpush.msra.mxu0 0.0
    %524 = vmatpush.msra.mxu0 0.0
    %525 = vmatpush.msra.mxu0 0.0
    %526 = vmatpush.msra.mxu0 0.0
    %527 = vmatpush.msra.mxu0 0.0
    %528 = vmatpush.msra.mxu0 0.0
    %529 = vmatpush.msra.mxu0 0.0
    %530 = vmatpush.msra.mxu0 0.0
    %531 = vmatpush.msra.mxu0 0.0
    %532 = vmatpush.msra.mxu0 %v346
    %533 = vmatmul.f32.gmra.mxu0 %v513
    %v534 = vpop.f32.mrf.mxu0
    %v535 = vadd.f32 0.0, %v534
    %536 = vmatmul.f32.gmra.mxu0 %v515
    %v537 = vpop.f32.mrf.mxu0
    %v538 = vadd.f32 0.0, %v537
    %539 = vdwg.mxu0
    %540 = vmatpush.msra.mxu0 %v329
    %541 = vmatpush.msra.mxu0 %v328
    %542 = vmatpush.msra.mxu0 %v327
    %543 = vmatpush.msra.mxu0 %v326
    %544 = vmatpush.msra.mxu0 %v325
    %545 = vmatpush.msra.mxu0 %v324
    %546 = vmatpush.msra.mxu0 %v323
    %547 = vmatpush.msra.mxu0 %v322
    %548 = vmatpush.msra.mxu0 %v321
    %549 = vmatpush.msra.mxu0 %v320
    %550 = vmatpush.msra.mxu0 %v319
    %551 = vmatpush.msra.mxu0 %v318
    %552 = vmatpush.msra.mxu0 %v317
    %553 = vmatpush.msra.mxu0 %v316
    %554 = vmatpush.msra.mxu0 %v315
    %555 = vmatpush.msra.mxu0 %v314
    %556 = vmatmul.f32.gmra.mxu0 %v505
    %v557 = vpop.f32.mrf.mxu0
    %v558 = vadd.f32 %v535, %v557
    %559 = vmatmul.f32.gmra.mxu0 %v506
    %v560 = vpop.f32.mrf.mxu0
    %v561 = vadd.f32 %v538, %v560
    %562 = vdwg.mxu0
    %563 = vmatpush.msra.mxu0 %v345
    %564 = vmatpush.msra.mxu0 %v344
    %565 = vmatpush.msra.mxu0 %v343
    %566 = vmatpush.msra.mxu0 %v342
    %567 = vmatpush.msra.mxu0 %v341
    %568 = vmatpush.msra.mxu0 %v340
    %569 = vmatpush.msra.mxu0 %v339
    %570 = vmatpush.msra.mxu0 %v338
    %571 = vmatpush.msra.mxu0 %v337
    %572 = vmatpush.msra.mxu0 %v336
    %573 = vmatpush.msra.mxu0 %v335
    %574 = vmatpush.msra.mxu0 %v334
    %575 = vmatpush.msra.mxu0 %v333
    %576 = vmatpush.msra.mxu0 %v332
    %577 = vmatpush.msra.mxu0 %v331
    %578 = vmatpush.msra.mxu0 %v330
    %579 = vmatmul.f32.gmra.mxu0 %v511
    %v580 = vpop.f32.mrf.mxu0
    %v581 = vadd.f32 %v558, %v580
    %582 = vmatmul.f32.gmra.mxu0 %v512
    %v583 = vpop.f32.mrf.mxu0
    %v584 = vadd.f32 %v561, %v583
    %585 = vdwg.mxu0
    %586 = vmatpush.msra.mxu0 0.0
    %587 = vmatpush.msra.mxu0 0.0
    %588 = vmatpush.msra.mxu0 0.0
    %589 = vmatpush.msra.mxu0 0.0
    %590 = vmatpush.msra.mxu0 0.0
    %591 = vmatpush.msra.mxu0 0.0
    %592 = vmatpush.msra.mxu0 0.0
    %593 = vmatpush.msra.mxu0 0.0
    %594 = vmatpush.msra.mxu0 0.0
    %595 = vmatpush.msra.mxu0 0.0
    %596 = vmatpush.msra.mxu0 0.0
    %597 = vmatpush.msra.mxu0 0.0
    %598 = vmatpush.msra.mxu0 0.0
    %599 = vmatpush.msra.mxu0 0.0
    %600 = vmatpush.msra.mxu0 %v584
    %601 = vmatpush.msra.mxu0 %v581
    %602 = vmatmul.bf16.gmra.mxu0 %v255
    %v603 = vpop.f32.mrf.mxu0
    %v604 = vadd.f32 0.0, %v603
    %v605 = vpop.f32.mrf.mxu0
    %606 = vdwg.mxu0
    %v607 = vmul.f32 %v604, %v281
    %v609 = vsel %vm97, %v313, 0
    %611 = vmatpush.msra.mxu0 0.0
    %612 = vmatpush.msra.mxu0 0.0
    %613 = vmatpush.msra.mxu0 0.0
    %614 = vmatpush.msra.mxu0 0.0
    %615 = vmatpush.msra.mxu0 0.0
    %616 = vmatpush.msra.mxu0 0.0
    %617 = vmatpush.msra.mxu0 0.0
    %618 = vmatpush.msra.mxu0 0.0
    %619 = vmatpush.msra.mxu0 0.0
    %620 = vmatpush.msra.mxu0 0.0
    %621 = vmatpush.msra.mxu0 0.0
    %622 = vmatpush.msra.mxu0 0.0
    %623 = vmatpush.msra.mxu0 0.0
    %624 = vmatpush.msra.mxu0 0.0
    %625 = vmatpush.msra.mxu0 0.0
    %626 = vmatpush.msra.mxu0 %v347
    %627 = vmatmul.f32.gmra.mxu0 %v609
    %v628 = vpop.f32.mrf.mxu0
    %v629 = vadd.f32 0.0, %v628
    %630 = vdwg.mxu0
    %v631 = vadd.f32 %v607, %v629
    %v632 = vperm.slane %v348, 0
    %v633 = vadd.f32 %v631, %v632
    %v634 = vmax.f32 %v633, 0.0
    %v635 = vld [vmem:[%s6 + $0x1b0] sm:$0xff]
    %v636 = vld [vmem:[%s6 + $0x1b8] sm:$0xff]
    %v637 = vld [vmem:[%s6 + $0x1c0] sm:$0xff]
    %v638 = vld [vmem:[%s6 + $0x1c8] sm:$0xff]
    %v639 = vld [vmem:[%s6 + $0x1d0] sm:$0xff]
    %v640 = vld [vmem:[%s6 + $0x1d8] sm:$0xff]
    %v641 = vld [vmem:[%s6 + $0x1e0] sm:$0xff]
    %v642 = vld [vmem:[%s6 + $0x1e8] sm:$0xff]
    %v643 = vld [vmem:[%s6 + $0x1f0] sm:$0xff]
    %v644 = vld [vmem:[%s6 + $0x1f8] sm:$0xff]
    %v645 = vld [vmem:[%s6 + $0x200] sm:$0xff]
    %v646 = vld [vmem:[%s6 + $0x208] sm:$0xff]
    %v647 = vld [vmem:[%s6 + $0x210] sm:$0xff]
    %v648 = vld [vmem:[%s6 + $0x218] sm:$0xff]
    %v649 = vld [vmem:[%s6 + $0x220] sm:$0xff]
    %v650 = vld [vmem:[%s6 + $0x228] sm:$0xff]
    %v651 = vld [vmem:[%s6 + $0x230] sm:$0xff]
    %v652 = vld [vmem:[%s6 + $0x238] sm:$0xff]
    %v653 = vld [vmem:[%s6 + $0x240] sm:$0xff]
    %v654 = vld [vmem:[%s6 + $0x248] sm:$0xff]
    %v655 = vld [vmem:[%s6 + $0x250] sm:$0xff]
    %v656 = vld [vmem:[%s6 + $0x258] sm:$0xff]
    %v657 = vld [vmem:[%s6 + $0x260] sm:$0xff]
    %v658 = vld [vmem:[%s6 + $0x268] sm:$0xff]
    %v659 = vld [vmem:[%s6 + $0x270] sm:$0xff]
    %v660 = vld [vmem:[%s6 + $0x278] sm:$0xff]
    %v661 = vld [vmem:[%s6 + $0x280] sm:$0xff]
    %v662 = vld [vmem:[%s6 + $0x288] sm:$0xff]
    %v663 = vld [vmem:[%s6 + $0x290] sm:$0xff]
    %v664 = vld [vmem:[%s6 + $0x298] sm:$0xff]
    %v665 = vld [vmem:[%s6 + $0x2a0] sm:$0xff]
    %v666 = vld [vmem:[%s6 + $0x2a8] sm:$0xff]
    %v667 = vld [vmem:[%s6 + $0x2b0] sm:$0xff]
    %v668 = vld [vmem:[%s6 + $0x2b8] sm:$0xff]
    %v669 = vld [vmem:[%s6 + $0x2c0] sm:$0xff]
    %v670 = vld [vmem:[%s6 + $0x2c8] sm:$0xff]
    %v671 = vld [vmem:[%s6 + $0x2d0] sm:$0xff]
    %v672 = vld [vmem:[%s6 + $0x2d8] sm:$0xff]
    %v673 = vld [vmem:[%s6 + $0x2e0] sm:$0xff]
    %v674 = vld [vmem:[%s6 + $0x2e8] sm:$0xff]
    %v675 = vld [vmem:[%s6 + $0x2f0] sm:$0xff]
    %v676 = vld [vmem:[%s6 + $0x2f8] sm:$0xff]
    %v677 = vld [vmem:[%s6 + $0x300] sm:$0xff]
    %v678 = vld [vmem:[%s6 + $0x308] sm:$0xff]
    %v679 = vld [vmem:[%s6 + $0x310] sm:$0xff]
    %v680 = vld [vmem:[%s6 + $0x318] sm:$0xff]
    %v681 = vld [vmem:[%s6 + $0x320] sm:$0xff]
    %v682 = vld [vmem:[%s6 + $0x328] sm:$0xff]
    %v683 = vld [vmem:[%s6 + $0x330] sm:$0xff]
    %v684 = vld [vmem:[%s6 + $0x338] sm:$0xff]
    %v685 = vld [vmem:[%s6 + $0x340] sm:$0xff]
    %v686 = vld [vmem:[%s6 + $0x348] sm:$0xff]
    %v687 = vld [vmem:[%s6 + $0x350] sm:$0xff]
    %v688 = vld [vmem:[%s6 + $0x358] sm:$0xff]
    %v689 = vld [vmem:[%s6 + $0x360] sm:$0xff]
    %v690 = vld [vmem:[%s6 + $0x368] sm:$0xff]
    %v691 = vld [vmem:[%s6 + $0x370] sm:$0xff]
    %v692 = vld [vmem:[%s6 + $0x378] sm:$0xff]
    %v693 = vld [vmem:[%s6 + $0x380] sm:$0xff]
    %v694 = vld [vmem:[%s6 + $0x388] sm:$0xff]
    %v695 = vld [vmem:[%s6 + $0x390] sm:$0xff]
    %v696 = vld [vmem:[%s6 + $0x398] sm:$0xff]
    %v697 = vld [vmem:[%s6 + $0x3a0] sm:$0xff]
    %v698 = vld [vmem:[%s6 + $0x3a8] sm:$0xff]
    %v699 = vld [vmem:[%s6 + $0x3b0] sm:$0xff]
    %v700 = vld [vmem:[%s6 + $0x3b8] sm:$0xff]
    %v701 = vld [vmem:[%s6 + $0x3c0] sm:$0x1]
    %702 = vmatpush.msra.mxu0 0.0
    %703 = vmatpush.msra.mxu0 0.0
    %704 = vmatpush.msra.mxu0 0.0
    %705 = vmatpush.msra.mxu0 0.0
    %706 = vmatpush.msra.mxu0 0.0
    %707 = vmatpush.msra.mxu0 0.0
    %708 = vmatpush.msra.mxu0 0.0
    %709 = vmatpush.msra.mxu0 0.0
    %710 = vmatpush.msra.mxu0 0.0
    %711 = vmatpush.msra.mxu0 0.0
    %712 = vmatpush.msra.mxu0 0.0
    %713 = vmatpush.msra.mxu0 0.0
    %714 = vmatpush.msra.mxu0 0.0
    %715 = vmatpush.msra.mxu0 0.0
    %716 = vmatpush.msra.mxu0 0.0
    %717 = vmatpush.msra.mxu0 %v634
    %718 = vmatmul.bf16.gmra.mxu0 %v99
    %v719 = vpop.f32.mrf.mxu0
    %v720 = vadd.f32 0.0, %v719
    %v721 = vpop.f32.mrf.mxu0
    %v722 = vadd.f32 0.0, %v721
    %723 = vdwg.mxu0
    %725 = vset.pattern.permute.xlu0 0
    %726 = vperm.xlu0 %725, %v720
    %v727 = vpop.permute.xlu0 %726
    %730 = vset.pattern.permute.xlu0 0
    %731 = vperm.xlu0 %730, %v722
    %v732 = vpop.permute.xlu0 %731
    %v734 = vmul.f32 %v727, %v71
    %v735 = vmul.f32 %v732, %v72
    %736 = vset.pattern.permute.xlu0 1
    %737 = vperm.xlu0 %736, %v720
    %v738 = vpop.permute.xlu0 %737
    %740 = vset.pattern.permute.xlu0 1
    %741 = vperm.xlu0 %740, %v722
    %v742 = vpop.permute.xlu0 %741
    %v744 = vmul.f32 %v738, %v71
    %v745 = vmul.f32 %v742, %v72
    %746 = vset.pattern.permute.xlu0 2
    %747 = vperm.xlu0 %746, %v720
    %v748 = vpop.permute.xlu0 %747
    %750 = vset.pattern.permute.xlu0 2
    %751 = vperm.xlu0 %750, %v722
    %v752 = vpop.permute.xlu0 %751
    %v754 = vmul.f32 %v748, %v71
    %v755 = vmul.f32 %v752, %v72
    %756 = vset.pattern.permute.xlu0 3
    %757 = vperm.xlu0 %756, %v720
    %v758 = vpop.permute.xlu0 %757
    %760 = vset.pattern.permute.xlu0 3
    %761 = vperm.xlu0 %760, %v722
    %v762 = vpop.permute.xlu0 %761
    %v764 = vmul.f32 %v758, %v71
    %v765 = vmul.f32 %v762, %v72
    %766 = vset.pattern.permute.xlu0 4
    %767 = vperm.xlu0 %766, %v720
    %v768 = vpop.permute.xlu0 %767
    %770 = vset.pattern.permute.xlu0 4
    %771 = vperm.xlu0 %770, %v722
    %v772 = vpop.permute.xlu0 %771
    %v774 = vmul.f32 %v768, %v71
    %v775 = vmul.f32 %v772, %v72
    %776 = vset.pattern.permute.xlu0 5
    %777 = vperm.xlu0 %776, %v720
    %v778 = vpop.permute.xlu0 %777
    %780 = vset.pattern.permute.xlu0 5
    %781 = vperm.xlu0 %780, %v722
    %v782 = vpop.permute.xlu0 %781
    %v784 = vmul.f32 %v778, %v71
    %v785 = vmul.f32 %v782, %v72
    %786 = vset.pattern.permute.xlu0 6
    %787 = vperm.xlu0 %786, %v720
    %v788 = vpop.permute.xlu0 %787
    %790 = vset.pattern.permute.xlu0 6
    %791 = vperm.xlu0 %790, %v722
    %v792 = vpop.permute.xlu0 %791
    %v794 = vmul.f32 %v788, %v71
    %v795 = vmul.f32 %v792, %v72
    %796 = vset.pattern.permute.xlu0 7
    %797 = vperm.xlu0 %796, %v720
    %v798 = vpop.permute.xlu0 %797
    %800 = vset.pattern.permute.xlu0 7
    %801 = vperm.xlu0 %800, %v722
    %v802 = vpop.permute.xlu0 %801
    %v804 = vmul.f32 %v798, %v71
    %v805 = vmul.f32 %v802, %v72
    %808 = vrot.lane.b32.xlu0 %v734, 64
    %v809 = vpop.permute.xlu0 %808
    %810 = vrot.lane.b32.xlu0 %v735, 64
    %v811 = vpop.permute.xlu0 %810
    %816 = vrot.lane.b32.xlu0 %v754, 64
    %v817 = vpop.permute.xlu0 %816
    %818 = vrot.lane.b32.xlu0 %v755, 64
    %v819 = vpop.permute.xlu0 %818
    %824 = vrot.lane.b32.xlu0 %v774, 64
    %v825 = vpop.permute.xlu0 %824
    %826 = vrot.lane.b32.xlu0 %v775, 64
    %v827 = vpop.permute.xlu0 %826
    %832 = vrot.lane.b32.xlu0 %v794, 64
    %v833 = vpop.permute.xlu0 %832
    %834 = vrot.lane.b32.xlu0 %v795, 64
    %v835 = vpop.permute.xlu0 %834
    %v838 = vsel %vm192, %v809, %v744
    %v839 = vsel %vm192, %v811, %v745
    %v840 = vsel %vm192, %v817, %v764
    %v841 = vsel %vm192, %v819, %v765
    %v842 = vsel %vm192, %v825, %v784
    %v843 = vsel %vm192, %v827, %v785
    %v844 = vsel %vm192, %v833, %v804
    %v845 = vsel %vm192, %v835, %v805
    %v846 = vsel %vm97, %v720, 0
    %v848 = vsel %vm97, %v722, 0
    %850 = vmatpush.msra.mxu0 0.0
    %851 = vmatpush.msra.mxu0 0.0
    %852 = vmatpush.msra.mxu0 0.0
    %853 = vmatpush.msra.mxu0 0.0
    %854 = vmatpush.msra.mxu0 0.0
    %855 = vmatpush.msra.mxu0 0.0
    %856 = vmatpush.msra.mxu0 0.0
    %857 = vmatpush.msra.mxu0 0.0
    %858 = vmatpush.msra.mxu0 0.0
    %859 = vmatpush.msra.mxu0 0.0
    %860 = vmatpush.msra.mxu0 0.0
    %861 = vmatpush.msra.mxu0 0.0
    %862 = vmatpush.msra.mxu0 0.0
    %863 = vmatpush.msra.mxu0 0.0
    %864 = vmatpush.msra.mxu0 0.0
    %865 = vmatpush.msra.mxu0 %v699
    %866 = vmatmul.f32.gmra.mxu0 %v846
    %v867 = vpop.f32.mrf.mxu0
    %v868 = vadd.f32 0.0, %v867
    %869 = vmatmul.f32.gmra.mxu0 %v848
    %v870 = vpop.f32.mrf.mxu0
    %v871 = vadd.f32 0.0, %v870
    %872 = vdwg.mxu0
    %873 = vmatpush.msra.mxu0 %v650
    %874 = vmatpush.msra.mxu0 %v649
    %875 = vmatpush.msra.mxu0 %v648
    %876 = vmatpush.msra.mxu0 %v647
    %877 = vmatpush.msra.mxu0 %v646
    %878 = vmatpush.msra.mxu0 %v645
    %879 = vmatpush.msra.mxu0 %v644
    %880 = vmatpush.msra.mxu0 %v643
    %881 = vmatpush.msra.mxu0 %v642
    %882 = vmatpush.msra.mxu0 %v641
    %883 = vmatpush.msra.mxu0 %v640
    %884 = vmatpush.msra.mxu0 %v639
    %885 = vmatpush.msra.mxu0 %v638
    %886 = vmatpush.msra.mxu0 %v637
    %887 = vmatpush.msra.mxu0 %v636
    %888 = vmatpush.msra.mxu0 %v635
    %889 = vmatmul.f32.gmra.mxu0 %v838
    %v890 = vpop.f32.mrf.mxu0
    %v891 = vadd.f32 %v868, %v890
    %892 = vmatmul.f32.gmra.mxu0 %v839
    %v893 = vpop.f32.mrf.mxu0
    %v894 = vadd.f32 %v871, %v893
    %895 = vdwg.mxu0
    %896 = vmatpush.msra.mxu0 %v666
    %897 = vmatpush.msra.mxu0 %v665
    %898 = vmatpush.msra.mxu0 %v664
    %899 = vmatpush.msra.mxu0 %v663
    %900 = vmatpush.msra.mxu0 %v662
    %901 = vmatpush.msra.mxu0 %v661
    %902 = vmatpush.msra.mxu0 %v660
    %903 = vmatpush.msra.mxu0 %v659
    %904 = vmatpush.msra.mxu0 %v658
    %905 = vmatpush.msra.mxu0 %v657
    %906 = vmatpush.msra.mxu0 %v656
    %907 = vmatpush.msra.mxu0 %v655
    %908 = vmatpush.msra.mxu0 %v654
    %909 = vmatpush.msra.mxu0 %v653
    %910 = vmatpush.msra.mxu0 %v652
    %911 = vmatpush.msra.mxu0 %v651
    %912 = vmatmul.f32.gmra.mxu0 %v840
    %v913 = vpop.f32.mrf.mxu0
    %v914 = vadd.f32 %v891, %v913
    %915 = vmatmul.f32.gmra.mxu0 %v841
    %v916 = vpop.f32.mrf.mxu0
    %v917 = vadd.f32 %v894, %v916
    %918 = vdwg.mxu0
    %919 = vmatpush.msra.mxu0 %v682
    %920 = vmatpush.msra.mxu0 %v681
    %921 = vmatpush.msra.mxu0 %v680
    %922 = vmatpush.msra.mxu0 %v679
    %923 = vmatpush.msra.mxu0 %v678
    %924 = vmatpush.msra.mxu0 %v677
    %925 = vmatpush.msra.mxu0 %v676
    %926 = vmatpush.msra.mxu0 %v675
    %927 = vmatpush.msra.mxu0 %v674
    %928 = vmatpush.msra.mxu0 %v673
    %929 = vmatpush.msra.mxu0 %v672
    %930 = vmatpush.msra.mxu0 %v671
    %931 = vmatpush.msra.mxu0 %v670
    %932 = vmatpush.msra.mxu0 %v669
    %933 = vmatpush.msra.mxu0 %v668
    %934 = vmatpush.msra.mxu0 %v667
    %935 = vmatmul.f32.gmra.mxu0 %v842
    %v936 = vpop.f32.mrf.mxu0
    %v937 = vadd.f32 %v914, %v936
    %938 = vmatmul.f32.gmra.mxu0 %v843
    %v939 = vpop.f32.mrf.mxu0
    %v940 = vadd.f32 %v917, %v939
    %941 = vdwg.mxu0
    %942 = vmatpush.msra.mxu0 %v698
    %943 = vmatpush.msra.mxu0 %v697
    %944 = vmatpush.msra.mxu0 %v696
    %945 = vmatpush.msra.mxu0 %v695
    %946 = vmatpush.msra.mxu0 %v694
    %947 = vmatpush.msra.mxu0 %v693
    %948 = vmatpush.msra.mxu0 %v692
    %949 = vmatpush.msra.mxu0 %v691
    %950 = vmatpush.msra.mxu0 %v690
    %951 = vmatpush.msra.mxu0 %v689
    %952 = vmatpush.msra.mxu0 %v688
    %953 = vmatpush.msra.mxu0 %v687
    %954 = vmatpush.msra.mxu0 %v686
    %955 = vmatpush.msra.mxu0 %v685
    %956 = vmatpush.msra.mxu0 %v684
    %957 = vmatpush.msra.mxu0 %v683
    %958 = vmatmul.f32.gmra.mxu0 %v844
    %v959 = vpop.f32.mrf.mxu0
    %v960 = vadd.f32 %v937, %v959
    %961 = vmatmul.f32.gmra.mxu0 %v845
    %v962 = vpop.f32.mrf.mxu0
    %v963 = vadd.f32 %v940, %v962
    %964 = vdwg.mxu0
    %v966 = vsel %vm97, %v634, 0
    %968 = vmatpush.msra.mxu0 0.0
    %969 = vmatpush.msra.mxu0 0.0
    %970 = vmatpush.msra.mxu0 0.0
    %971 = vmatpush.msra.mxu0 0.0
    %972 = vmatpush.msra.mxu0 0.0
    %973 = vmatpush.msra.mxu0 0.0
    %974 = vmatpush.msra.mxu0 0.0
    %975 = vmatpush.msra.mxu0 0.0
    %976 = vmatpush.msra.mxu0 0.0
    %977 = vmatpush.msra.mxu0 0.0
    %978 = vmatpush.msra.mxu0 0.0
    %979 = vmatpush.msra.mxu0 0.0
    %980 = vmatpush.msra.mxu0 0.0
    %981 = vmatpush.msra.mxu0 0.0
    %982 = vmatpush.msra.mxu0 0.0
    %983 = vmatpush.msra.mxu0 %v700
    %984 = vmatmul.f32.gmra.mxu0 %v966
    %v985 = vpop.f32.mrf.mxu0
    %v986 = vadd.f32 0.0, %v985
    %987 = vdwg.mxu0
    %988 = vmatpush.msra.mxu0 0.0
    %989 = vmatpush.msra.mxu0 0.0
    %990 = vmatpush.msra.mxu0 0.0
    %991 = vmatpush.msra.mxu0 0.0
    %992 = vmatpush.msra.mxu0 0.0
    %993 = vmatpush.msra.mxu0 0.0
    %994 = vmatpush.msra.mxu0 0.0
    %995 = vmatpush.msra.mxu0 0.0
    %996 = vmatpush.msra.mxu0 0.0
    %997 = vmatpush.msra.mxu0 0.0
    %998 = vmatpush.msra.mxu0 0.0
    %999 = vmatpush.msra.mxu0 0.0
    %1000 = vmatpush.msra.mxu0 0.0
    %1001 = vmatpush.msra.mxu0 0.0
    %1002 = vmatpush.msra.mxu0 %v963
    %1003 = vmatpush.msra.mxu0 %v960
    %1004 = vmatmul.bf16.gmra.mxu0 %v255
    %v1005 = vpop.f32.mrf.mxu0
    %v1006 = vadd.f32 %v986, %v1005
    %v1007 = vpop.f32.mrf.mxu0
    %1008 = vdwg.mxu0
    %v1009 = vperm.slane %v701, 0
    %v1010 = vadd.f32 %v1006, %v1009
    %1011 = vst.msk [vmem:[#allocation2] sm:$0xff] %vm97, %v1010
    // Predicated region
    $region30: #{tpu_custom_call.1} parent=1 // pred_check
      _
    $region31: #{tpu_custom_call.1} parent=1 // pred_check_branch
      %1013 = sbr.rel (0) target = $region33
    $region32: #{tpu_custom_call.1} parent=1 // pred_region
      %1015 = vsyncadd [#allocation3], 0
      %s1017 = sshll.u32 [#allocation2], 4
      %s1018 = int_to_ptr.vmem [resolvable:$true] %s1017
      %s1019 = sshll.u32 %s7, 4
      %s1020 = int_to_ptr.hbm [resolvable:$true] %s1019
      %1022 = dma.vmem_to_hbm [thread:$0]  %s1018, 128, %s1020, [#allocation3]
    $region33: #{tpu_custom_call.1} parent=1 // pred_fallthru
      _
    // Predicated region
    $region34: #{tpu_custom_call.1} parent=1 // pred_check
      _
    $region35: #{tpu_custom_call.1} parent=1 // pred_check_branch
      %1024 = sbr.rel (0) target = $region37
    $region36: #{tpu_custom_call.1} parent=1 // pred_region
      %1026 = dma.done [#allocation3], 128
    $region37: #{tpu_custom_call.1} parent=1 // pred_fallthru
      _
    %1027 = vsyncpa [#allocation3], 1

</llo_original>
